<compile_context>
chip_gen: v5e
topology: v5e:2x2
jax: 0.10.0
libtpu: 0.0.40
codegen_flags: <defaults>
</compile_context>

<pallas_src>
import functools

import jax
import jax.numpy as jnp
from jax.experimental import pallas as pl
from jax.experimental.pallas import tpu as pltpu

# Small-but-consistent synthetic dims (module defaults are D_in=1024, C=1024, T=16).
D_IN = 256          # clip_embeddings_dim (Linear input features)
CROSS_DIM = 128     # cross_attention_dim (LayerNorm normalized dim)
NUM_TOKENS = 8      # clip_extra_context_tokens
LN_EPS = 1e-5       # torch.nn.LayerNorm default


def _proj_norm_kernel(x_ref, w_ref, b_ref, g_ref, beta_ref, o_ref, y_scr, *,
                      c_dim, t_tile, eps):
    # x_ref:    (M, D_in)            bf16, resident across grid steps
    # w_ref:    (D_in, t_tile*C)     bf16 contiguous slab, streamed per grid step
    # b_ref:    (1, t_tile*C)        bf16 Linear-bias slice for this token block
    # g_ref:    (1, C)  LayerNorm weight (f32)
    # beta_ref: (1, C)  LayerNorm bias   (f32)
    # o_ref:    (M, t_tile*C)
    # y_scr:    (M, t_tile*C) f32 VMEM scratch — stage y+bias here so the unrolled
    #           LN loop reads 128-wide slices instead of holding all of y in vregs.
    y_scr[...] = (jnp.dot(x_ref[...], w_ref[...],
                          preferred_element_type=jnp.float32)
                  + b_ref[...].astype(jnp.float32))

    g = g_ref[...].astype(jnp.float32)
    beta = beta_ref[...].astype(jnp.float32)

    # Per-token LayerNorm over C, using static 128-aligned slices (no reshape /
    # relayout).  t_tile is a small compile-time constant.
    for i in range(t_tile):
        lo = i * c_dim
        yi = y_scr[:, lo:lo + c_dim]
        mu = jnp.mean(yi, axis=-1, keepdims=True)
        cen = yi - mu
        var = jnp.mean(cen * cen, axis=-1, keepdims=True)
        o_ref[:, lo:lo + c_dim] = (
            cen * jax.lax.rsqrt(var + eps) * g + beta).astype(o_ref.dtype)


def image_proj_model_forward(image_embeds, w, b, gamma, beta, *,
                             num_tokens=NUM_TOKENS, cross_dim=CROSS_DIM,
                             tokens_per_block=4):
    """image_embeds: (bs, num, D_in) -> (bs, num, num_tokens, cross_dim).

    w: (D_in, num_tokens*cross_dim)  (nn.Linear weight, transposed; bf16 ok)
    b: (num_tokens*cross_dim,)       (nn.Linear bias; bf16 ok)
    gamma/beta: (cross_dim,)         (nn.LayerNorm affine, f32)
    tokens_per_block: tokens per grid step; sweep per generation.  Keep
      num_tokens // tokens_per_block a multiple of 2 so the parallel grid axis can
      split across v7x's two TensorCores.  (If xprof shows only one TC busy on
      v7x, switch the axis to pltpu.CORE_PARALLEL.)
    """
    bs, num, d_in = image_embeds.shape
    out_feat = num_tokens * cross_dim
    assert w.shape == (d_in, out_feat), w.shape
    assert num_tokens % tokens_per_block == 0

    t_tile = tokens_per_block
    block_n = t_tile * cross_dim
    n_blocks = num_tokens // t_tile
    grid = (n_blocks,)

    m = bs * num
    m_pad = max(8, ((m + 7) // 8) * 8)          # pad rows to a sublane multiple
    # bf16 LHS -> native bf16 MXU path, and the streamed W tile stays bf16 in VMEM.
    x = image_embeds.reshape(m, d_in).astype(jnp.bfloat16)
    if m_pad != m:
        x = jnp.pad(x, ((0, m_pad - m), (0, 0)))

    # One-time relayout so each grid step's W slab is contiguous in HBM (one large
    # linear DMA).  In production, store the weight pre-tiled in this layout.
    w_bf = w.astype(jnp.bfloat16)
    w_tiled = jnp.transpose(w_bf.reshape(d_in, n_blocks, block_n), (1, 0, 2))

    b2 = b.astype(jnp.bfloat16).reshape(1, out_feat)
    g2 = gamma.astype(jnp.float32).reshape(1, cross_dim)
    be2 = beta.astype(jnp.float32).reshape(1, cross_dim)

    out_dtype = image_embeds.dtype
    out_itemsize = jnp.dtype(out_dtype).itemsize

    # Right-sized VMEM budget (v7x has only 64 MiB physical VMEM per TC):
    #   2x double-buffered W slab + 2x output tile + 2x resident x + f32 scratch
    #   + headroom for bias / LN params / compiler internals.
    vmem_bytes = (2 * d_in * block_n * 2          # W slabs (bf16)
                  + 2 * m_pad * block_n * out_itemsize
                  + 2 * m_pad * d_in * 2          # x (bf16)
                  + m_pad * block_n * 4           # f32 scratch
                  + (2 << 20))
    vmem_bytes = int(min(max(vmem_bytes, 8 << 20), 64 << 20))

    itemsize = lambda a: a.size * a.dtype.itemsize
    cost = pl.CostEstimate(
        flops=2 * m_pad * d_in * out_feat,
        transcendentals=m_pad * num_tokens,          # one rsqrt per (row, token)
        bytes_accessed=(itemsize(x) + itemsize(w_tiled) + itemsize(b2)
                        + itemsize(g2) + itemsize(be2)
                        + m_pad * out_feat * out_itemsize),
    )

    kernel = functools.partial(_proj_norm_kernel, c_dim=cross_dim,
                               t_tile=t_tile, eps=LN_EPS)

    out = pl.pallas_call(
        kernel,
        out_shape=jax.ShapeDtypeStruct((m_pad, out_feat), out_dtype),
        grid_spec=pltpu.PrefetchScalarGridSpec(
            num_scalar_prefetch=0,
            grid=grid,
            in_specs=[
                pl.BlockSpec((m_pad, d_in), lambda t: (0, 0)),            # x (resident)
                pl.BlockSpec((None, d_in, block_n), lambda t: (t, 0, 0)),  # W slab (contiguous, streamed)
                pl.BlockSpec((1, block_n), lambda t: (0, t)),             # bias slice
                pl.BlockSpec((1, cross_dim), lambda t: (0, 0)),           # LN gamma
                pl.BlockSpec((1, cross_dim), lambda t: (0, 0)),           # LN beta
            ],
            out_specs=pl.BlockSpec((m_pad, block_n), lambda t: (0, t)),
            scratch_shapes=[pltpu.VMEM((m_pad, block_n), jnp.float32)],
        ),
        compiler_params=pltpu.CompilerParams(
            dimension_semantics=("parallel",),   # independent token tiles
            vmem_limit_bytes=vmem_bytes,
        ),
        cost_estimate=cost,
    )(x, w_tiled, b2, g2, be2)

    return out[:m].reshape(bs, num, num_tokens, cross_dim)


def init_params(key, d_in=D_IN, num_tokens=NUM_TOKENS, cross_dim=CROSS_DIM):
    """Synthetic init mirroring nn.Linear / nn.LayerNorm param shapes.

    Linear weight/bias are stored in bf16 (HBM-traffic optimization); LayerNorm
    affine stays f32 (torch defaults: weight=1, bias=0).
    """
    k_w, k_b = jax.random.split(key)
    out_feat = num_tokens * cross_dim
    bound = 1.0 / jnp.sqrt(d_in)
    # torch Linear weight is (out, in); we store transposed (in, out) for x @ W.
    w = jax.random.uniform(k_w, (d_in, out_feat), jnp.float32, -bound, bound)
    b = jax.random.uniform(k_b, (out_feat,), jnp.float32, -bound, bound)
    w = w.astype(jnp.bfloat16)
    b = b.astype(jnp.bfloat16)
    gamma = jnp.ones((cross_dim,), jnp.float32)
    beta = jnp.zeros((cross_dim,), jnp.float32)
    return w, b, gamma, beta


if __name__ == "__main__":
    key = jax.random.PRNGKey(0)
    k_x, k_p = jax.random.split(key)

    bs, num = 2, 2
    image_embeds = jax.random.normal(k_x, (bs, num, D_IN), jnp.float32)
    w, b, gamma, beta = init_params(k_p)

    out = image_proj_model_forward(image_embeds, w, b, gamma, beta)
    out = jax.block_until_ready(out)

    # Reference in plain JAX (same bf16 x / W / bias, f32 accumulation + LN math).
    x_bf = image_embeds.reshape(bs * num, D_IN).astype(jnp.bfloat16)
    x32 = x_bf.astype(jnp.float32)
    w32 = w.astype(jnp.float32)
    b32 = b.astype(jnp.float32)
    ref = (x32 @ w32 + b32).reshape(bs, num, NUM_TOKENS, CROSS_DIM)
    mu = ref.mean(-1, keepdims=True)
    var = ((ref - mu) ** 2).mean(-1, keepdims=True)
    ref = (ref - mu) * jax.lax.rsqrt(var + LN_EPS) * gamma + beta

    assert out.shape == (bs, num, NUM_TOKENS, CROSS_DIM), out.shape
    err = float(jnp.max(jnp.abs(out - ref)))
    assert err < 2e-3, err

    print("KERNEL_OK")
</pallas_src>

<mosaic_0001>
module attributes {stable_mosaic.version = 11 : i64} {
  func.func @_proj_norm_kernel(%arg0: i32, %arg1: memref<8x256xbf16, #tpu.memory_space<vmem>>, %arg2: memref<1x256x512xbf16, #tpu.memory_space<vmem>>, %arg3: memref<1x512xbf16, #tpu.memory_space<vmem>>, %arg4: memref<1x128xf32, #tpu.memory_space<vmem>>, %arg5: memref<1x128xf32, #tpu.memory_space<vmem>>, %arg6: memref<8x512xf32, #tpu.memory_space<vmem>>, %arg7: memref<8x512xf32, #tpu.memory_space<vmem>>) attributes {dimension_semantics = [#tpu.dimension_semantics<parallel>], iteration_bounds = array<i64: 2>, scalar_prefetch = 0 : i64, scratch_operands = 1 : i64, tpu.core_type = #tpu.core_type<tc>, window_params = [{pipeline_mode = #tpu.pipeline_mode<synchronous>, transform_indices = @transform_0, window_bounds = array<i64: 8, 256>}, {transform_indices = @transform_1, window_bounds = array<i64: 1, 256, 512>}, {transform_indices = @transform_2, window_bounds = array<i64: 1, 512>}, {pipeline_mode = #tpu.pipeline_mode<synchronous>, transform_indices = @transform_3, window_bounds = array<i64: 1, 128>}, {pipeline_mode = #tpu.pipeline_mode<synchronous>, transform_indices = @transform_4, window_bounds = array<i64: 1, 128>}, {transform_indices = @transform_5, window_bounds = array<i64: 8, 512>}]} {
    %c0 = arith.constant 0 : index
    %c0_0 = arith.constant 0 : index
    %0 = vector.load %arg1[%c0, %c0_0] : memref<8x256xbf16, #tpu.memory_space<vmem>>, vector<8x256xbf16>
    %c0_1 = arith.constant 0 : index
    %c0_2 = arith.constant 0 : index
    %c0_3 = arith.constant 0 : index
    %1 = vector.load %arg2[%c0_1, %c0_2, %c0_3] : memref<1x256x512xbf16, #tpu.memory_space<vmem>>, vector<1x256x512xbf16>
    %2 = vector.shape_cast %1 : vector<1x256x512xbf16> to vector<256x512xbf16>
    %cst = arith.constant dense<0.000000e+00> : vector<8x512xf32>
    %3 = tpu.matmul %0, %2, %cst {dimension_numbers = #tpu.dot_dimension_numbers<[1], [0], [0], [1], [0, 0, 1, 1], [], []>} : vector<8x256xbf16>, vector<256x512xbf16>, vector<8x512xf32> -> vector<8x512xf32>
    %c0_4 = arith.constant 0 : index
    %c0_5 = arith.constant 0 : index
    %4 = vector.load %arg3[%c0_4, %c0_5] : memref<1x512xbf16, #tpu.memory_space<vmem>>, vector<1x512xbf16>
    %5 = arith.extf %4 : vector<1x512xbf16> to vector<1x512xf32>
    %6 = vector.broadcast %5 : vector<1x512xf32> to vector<8x512xf32>
    %7 = arith.addf %3, %6 : vector<8x512xf32>
    %c0_6 = arith.constant 0 : index
    %c0_7 = arith.constant 0 : index
    %8 = vector.load %arg7[%c0_6, %c0_7] : memref<8x512xf32, #tpu.memory_space<vmem>>, vector<8x512xf32>
    tpu.vector_store %arg7[%c0_6, %c0_7], %7 {strides = array<i32>} : memref<8x512xf32, #tpu.memory_space<vmem>>, vector<8x512xf32>,
    %c0_8 = arith.constant 0 : index
    %c0_9 = arith.constant 0 : index
    %9 = vector.load %arg4[%c0_8, %c0_9] : memref<1x128xf32, #tpu.memory_space<vmem>>, vector<1x128xf32>
    %c0_10 = arith.constant 0 : index
    %c0_11 = arith.constant 0 : index
    %10 = vector.load %arg5[%c0_10, %c0_11] : memref<1x128xf32, #tpu.memory_space<vmem>>, vector<1x128xf32>
    %c0_12 = arith.constant 0 : index
    %c0_13 = arith.constant 0 : index
    %11 = vector.load %arg7[%c0_12, %c0_13] : memref<8x512xf32, #tpu.memory_space<vmem>>, vector<8x128xf32>
    %cst_14 = arith.constant dense<0.000000e+00> : vector<8xf32>
    %12 = vector.multi_reduction <add>, %11, %cst_14 [1] : vector<8x128xf32> to vector<8xf32>
    %13 = vector.shape_cast %12 : vector<8xf32> to vector<8x1xf32>
    %cst_15 = arith.constant 1.280000e+02 : f32
    %14 = vector.broadcast %cst_15 : f32 to vector<8x1xf32>
    %15 = arith.divf %13, %14 : vector<8x1xf32>
    %16 = vector.broadcast %15 : vector<8x1xf32> to vector<8x128xf32>
    %17 = arith.subf %11, %16 : vector<8x128xf32>
    %18 = arith.mulf %17, %17 : vector<8x128xf32>
    %cst_16 = arith.constant dense<0.000000e+00> : vector<8xf32>
    %19 = vector.multi_reduction <add>, %18, %cst_16 [1] : vector<8x128xf32> to vector<8xf32>
    %20 = vector.shape_cast %19 : vector<8xf32> to vector<8x1xf32>
    %cst_17 = arith.constant 1.280000e+02 : f32
    %21 = vector.broadcast %cst_17 : f32 to vector<8x1xf32>
    %22 = arith.divf %20, %21 : vector<8x1xf32>
    %cst_18 = arith.constant 9.99999974E-6 : f32
    %23 = vector.broadcast %cst_18 : f32 to vector<8x1xf32>
    %24 = arith.addf %22, %23 : vector<8x1xf32>
    %25 = math.rsqrt %24 : vector<8x1xf32>
    %26 = vector.broadcast %25 : vector<8x1xf32> to vector<8x128xf32>
    %27 = arith.mulf %17, %26 : vector<8x128xf32>
    %28 = vector.broadcast %9 : vector<1x128xf32> to vector<8x128xf32>
    %29 = arith.mulf %27, %28 : vector<8x128xf32>
    %30 = vector.broadcast %10 : vector<1x128xf32> to vector<8x128xf32>
    %31 = arith.addf %29, %30 : vector<8x128xf32>
    %c0_19 = arith.constant 0 : index
    %c0_20 = arith.constant 0 : index
    %32 = vector.load %arg6[%c0_19, %c0_20] : memref<8x512xf32, #tpu.memory_space<vmem>>, vector<8x128xf32>
    tpu.vector_store %arg6[%c0_19, %c0_20], %31 {strides = array<i32>} : memref<8x512xf32, #tpu.memory_space<vmem>>, vector<8x128xf32>,
    %c0_21 = arith.constant 0 : index
    %c128 = arith.constant 128 : index
    %33 = vector.load %arg7[%c0_21, %c128] : memref<8x512xf32, #tpu.memory_space<vmem>>, vector<8x128xf32>
    %cst_22 = arith.constant dense<0.000000e+00> : vector<8xf32>
    %34 = vector.multi_reduction <add>, %33, %cst_22 [1] : vector<8x128xf32> to vector<8xf32>
    %35 = vector.shape_cast %34 : vector<8xf32> to vector<8x1xf32>
    %cst_23 = arith.constant 1.280000e+02 : f32
    %36 = vector.broadcast %cst_23 : f32 to vector<8x1xf32>
    %37 = arith.divf %35, %36 : vector<8x1xf32>
    %38 = vector.broadcast %37 : vector<8x1xf32> to vector<8x128xf32>
    %39 = arith.subf %33, %38 : vector<8x128xf32>
    %40 = arith.mulf %39, %39 : vector<8x128xf32>
    %cst_24 = arith.constant dense<0.000000e+00> : vector<8xf32>
    %41 = vector.multi_reduction <add>, %40, %cst_24 [1] : vector<8x128xf32> to vector<8xf32>
    %42 = vector.shape_cast %41 : vector<8xf32> to vector<8x1xf32>
    %cst_25 = arith.constant 1.280000e+02 : f32
    %43 = vector.broadcast %cst_25 : f32 to vector<8x1xf32>
    %44 = arith.divf %42, %43 : vector<8x1xf32>
    %cst_26 = arith.constant 9.99999974E-6 : f32
    %45 = vector.broadcast %cst_26 : f32 to vector<8x1xf32>
    %46 = arith.addf %44, %45 : vector<8x1xf32>
    %47 = math.rsqrt %46 : vector<8x1xf32>
    %48 = vector.broadcast %47 : vector<8x1xf32> to vector<8x128xf32>
    %49 = arith.mulf %39, %48 : vector<8x128xf32>
    %50 = vector.broadcast %9 : vector<1x128xf32> to vector<8x128xf32>
    %51 = arith.mulf %49, %50 : vector<8x128xf32>
    %52 = vector.broadcast %10 : vector<1x128xf32> to vector<8x128xf32>
    %53 = arith.addf %51, %52 : vector<8x128xf32>
    %c0_27 = arith.constant 0 : index
    %c128_28 = arith.constant 128 : index
    %54 = vector.load %arg6[%c0_27, %c128_28] : memref<8x512xf32, #tpu.memory_space<vmem>>, vector<8x128xf32>
    tpu.vector_store %arg6[%c0_27, %c128_28], %53 {strides = array<i32>} : memref<8x512xf32, #tpu.memory_space<vmem>>, vector<8x128xf32>,
    %c0_29 = arith.constant 0 : index
    %c256 = arith.constant 256 : index
    %55 = vector.load %arg7[%c0_29, %c256] : memref<8x512xf32, #tpu.memory_space<vmem>>, vector<8x128xf32>
    %cst_30 = arith.constant dense<0.000000e+00> : vector<8xf32>
    %56 = vector.multi_reduction <add>, %55, %cst_30 [1] : vector<8x128xf32> to vector<8xf32>
    %57 = vector.shape_cast %56 : vector<8xf32> to vector<8x1xf32>
    %cst_31 = arith.constant 1.280000e+02 : f32
    %58 = vector.broadcast %cst_31 : f32 to vector<8x1xf32>
    %59 = arith.divf %57, %58 : vector<8x1xf32>
    %60 = vector.broadcast %59 : vector<8x1xf32> to vector<8x128xf32>
    %61 = arith.subf %55, %60 : vector<8x128xf32>
    %62 = arith.mulf %61, %61 : vector<8x128xf32>
    %cst_32 = arith.constant dense<0.000000e+00> : vector<8xf32>
    %63 = vector.multi_reduction <add>, %62, %cst_32 [1] : vector<8x128xf32> to vector<8xf32>
    %64 = vector.shape_cast %63 : vector<8xf32> to vector<8x1xf32>
    %cst_33 = arith.constant 1.280000e+02 : f32
    %65 = vector.broadcast %cst_33 : f32 to vector<8x1xf32>
    %66 = arith.divf %64, %65 : vector<8x1xf32>
    %cst_34 = arith.constant 9.99999974E-6 : f32
    %67 = vector.broadcast %cst_34 : f32 to vector<8x1xf32>
    %68 = arith.addf %66, %67 : vector<8x1xf32>
    %69 = math.rsqrt %68 : vector<8x1xf32>
    %70 = vector.broadcast %69 : vector<8x1xf32> to vector<8x128xf32>
    %71 = arith.mulf %61, %70 : vector<8x128xf32>
    %72 = vector.broadcast %9 : vector<1x128xf32> to vector<8x128xf32>
    %73 = arith.mulf %71, %72 : vector<8x128xf32>
    %74 = vector.broadcast %10 : vector<1x128xf32> to vector<8x128xf32>
    %75 = arith.addf %73, %74 : vector<8x128xf32>
    %c0_35 = arith.constant 0 : index
    %c256_36 = arith.constant 256 : index
    %76 = vector.load %arg6[%c0_35, %c256_36] : memref<8x512xf32, #tpu.memory_space<vmem>>, vector<8x128xf32>
    tpu.vector_store %arg6[%c0_35, %c256_36], %75 {strides = array<i32>} : memref<8x512xf32, #tpu.memory_space<vmem>>, vector<8x128xf32>,
    %c0_37 = arith.constant 0 : index
    %c384 = arith.constant 384 : index
    %77 = vector.load %arg7[%c0_37, %c384] : memref<8x512xf32, #tpu.memory_space<vmem>>, vector<8x128xf32>
    %cst_38 = arith.constant dense<0.000000e+00> : vector<8xf32>
    %78 = vector.multi_reduction <add>, %77, %cst_38 [1] : vector<8x128xf32> to vector<8xf32>
    %79 = vector.shape_cast %78 : vector<8xf32> to vector<8x1xf32>
    %cst_39 = arith.constant 1.280000e+02 : f32
    %80 = vector.broadcast %cst_39 : f32 to vector<8x1xf32>
    %81 = arith.divf %79, %80 : vector<8x1xf32>
    %82 = vector.broadcast %81 : vector<8x1xf32> to vector<8x128xf32>
    %83 = arith.subf %77, %82 : vector<8x128xf32>
    %84 = arith.mulf %83, %83 : vector<8x128xf32>
    %cst_40 = arith.constant dense<0.000000e+00> : vector<8xf32>
    %85 = vector.multi_reduction <add>, %84, %cst_40 [1] : vector<8x128xf32> to vector<8xf32>
    %86 = vector.shape_cast %85 : vector<8xf32> to vector<8x1xf32>
    %cst_41 = arith.constant 1.280000e+02 : f32
    %87 = vector.broadcast %cst_41 : f32 to vector<8x1xf32>
    %88 = arith.divf %86, %87 : vector<8x1xf32>
    %cst_42 = arith.constant 9.99999974E-6 : f32
    %89 = vector.broadcast %cst_42 : f32 to vector<8x1xf32>
    %90 = arith.addf %88, %89 : vector<8x1xf32>
    %91 = math.rsqrt %90 : vector<8x1xf32>
    %92 = vector.broadcast %91 : vector<8x1xf32> to vector<8x128xf32>
    %93 = arith.mulf %83, %92 : vector<8x128xf32>
    %94 = vector.broadcast %9 : vector<1x128xf32> to vector<8x128xf32>
    %95 = arith.mulf %93, %94 : vector<8x128xf32>
    %96 = vector.broadcast %10 : vector<1x128xf32> to vector<8x128xf32>
    %97 = arith.addf %95, %96 : vector<8x128xf32>
    %c0_43 = arith.constant 0 : index
    %c384_44 = arith.constant 384 : index
    %98 = vector.load %arg6[%c0_43, %c384_44] : memref<8x512xf32, #tpu.memory_space<vmem>>, vector<8x128xf32>
    tpu.vector_store %arg6[%c0_43, %c384_44], %97 {strides = array<i32>} : memref<8x512xf32, #tpu.memory_space<vmem>>, vector<8x128xf32>,
    return
  }
  func.func @transform_0(%arg0: i32) -> (i32, i32) {
    %c0_i32 = arith.constant 0 : i32
    %c0_i32_0 = arith.constant 0 : i32
    %c0_i32_1 = arith.constant 0 : i32
    return %c0_i32, %c0_i32_0 : i32, i32
  }
  func.func @transform_1(%arg0: i32) -> (i32, i32, i32) {
    %c0_i32 = arith.constant 0 : i32
    %c0_i32_0 = arith.constant 0 : i32
    %c0_i32_1 = arith.constant 0 : i32
    return %arg0, %c0_i32, %c0_i32_0 : i32, i32, i32
  }
  func.func @transform_2(%arg0: i32) -> (i32, i32) {
    %c0_i32 = arith.constant 0 : i32
    %c0_i32_0 = arith.constant 0 : i32
    return %c0_i32, %arg0 : i32, i32
  }
  func.func @transform_3(%arg0: i32) -> (i32, i32) {
    %c0_i32 = arith.constant 0 : i32
    %c0_i32_0 = arith.constant 0 : i32
    %c0_i32_1 = arith.constant 0 : i32
    return %c0_i32, %c0_i32_0 : i32, i32
  }
  func.func @transform_4(%arg0: i32) -> (i32, i32) {
    %c0_i32 = arith.constant 0 : i32
    %c0_i32_0 = arith.constant 0 : i32
    %c0_i32_1 = arith.constant 0 : i32
    return %c0_i32, %c0_i32_0 : i32, i32
  }
  func.func @transform_5(%arg0: i32) -> (i32, i32) {
    %c0_i32 = arith.constant 0 : i32
    %c0_i32_0 = arith.constant 0 : i32
    return %c0_i32, %arg0 : i32, i32
  }
}

</mosaic_0001>

<llo_original>
// kernel: tpu_custom_call.1
$region0: #{tpu_custom_call.1}
  #allocation0 [shape = 'u32[]', space=smem, size = 0x4, offset = 0x4, fixed_abs, tag = 'smem constant byte address 0x4 - core index']
  #allocation1 [shape = 'u32[72,128]{1,0:T(1,128)}', space=vmem, size = 0x9000, scoped, tag = 'internal scratch']
  #allocation2 [shape = 'f32[8,512]{1,0:T(8,128)}', space=vmem, size = 0x4000, scoped, tag = 'scratch operand']
  %s0 = inlined_call_operand.hbm [shape: bf16[8,256], index: 0, kind: input, shape index: {}]
  %s1 = inlined_call_operand.hbm [shape: bf16[2,256,512], index: 1, kind: input, shape index: {}]
  %s2 = inlined_call_operand.hbm [shape: bf16[1,1024], index: 2, kind: input, shape index: {}]
  %s3 = inlined_call_operand.vmem [shape: f32[1,128], index: 3, kind: input, shape index: {}]
  %s4 = inlined_call_operand.vmem [shape: f32[1,128], index: 4, kind: input, shape index: {}]
  %s5 = inlined_call_operand.hbm [shape: f32[8,1024], index: 5, kind: output, shape index: {}]
  %s6 = sld [smem:[#allocation0]]
  $region65: #{tpu_custom_call.1} parent=0
    _
  %s8 = ssub.s32 1, %s6
  %s9 = scalar_select 0, %s8, %s6
  $region1: #{tpu_custom_call.1} parent=0
    #allocation3 [shape = 'u8[4096]{0}', space=vmem, size = 0x1000, scoped, tag = 'input window, operand 0, single buffered']
    #allocation4 [shape = 's32[2]{0}', space=sflag, size = 0x8, scoped, tag = 'scoped memory for tpu_custom_call.1']
    #allocation5 [shape = 's32[2]{0}', space=sflag, size = 0x8, scoped, tag = 'scoped memory for tpu_custom_call.1']
    #allocation6 [shape = 'u8[524288]{0}', space=vmem, size = 0x80000, scoped, tag = 'input window, operand 1']
    #allocation7 [shape = 's32[2]{0}', space=sflag, size = 0x8, scoped, tag = 'scoped memory for tpu_custom_call.1']
    #allocation8 [shape = 'u8[4096]{0}', space=vmem, size = 0x1000, scoped, tag = 'input window, operand 2']
    #allocation9 [shape = 'u8[32768]{0}', space=vmem, size = 0x8000, scoped, tag = 'output window, operand 0']
    %10 = vsyncpa [#allocation4], 0
    %11 = vsyncpa [#allocation7], 0
    %s12 = scalar_lea.sflag [#allocation7], 1
    %13 = vsyncpa %s12, 0
    %14 = vsyncpa [#allocation5], 0
    %s15 = scalar_lea.sflag [#allocation5], 1
    %16 = vsyncpa %s15, 0
    loop: start=0, step=1, limit=4
    $region2: #{tpu_custom_call.1} parent=1 // loop_pre_header
      _
    $region3: #{tpu_custom_call.1} parent=1 // loop_header
      %s18 = sphi 0, %s22
      %p19 = scmp.ge.s32.totalorder %s18, 4
      %s26 = sphi 0, %s26
      %s28 = sphi 0, %s26
      %s29 = sphi 0, %s28
      %s43 = sphi 0, %s29
      %s49 = sphi 0, %s51
      %s52 = sphi 0, %s49
      %s53 = sphi 0, %s52
      %s69 = sphi 0, %s53
      %s75 = sphi 0, %s77
      %s78 = sphi 0, %s75
      %s79 = sphi 0, %s78
      %s95 = sphi 0, %s79
      %s99 = sphi 0, %s99
      %s101 = sphi 0, %s99
      %s102 = sphi 0, %s101
      %s116 = sphi 0, %s102
      %s120 = sphi 0, %s120
      %s122 = sphi 0, %s120
      %s123 = sphi 0, %s122
      %s137 = sphi 0, %s123
      %s143 = sphi 0, %s145
      %s146 = sphi 0, %s143
      %s147 = sphi 0, %s146
      %s163 = sphi 0, %s147
    $region4: #{tpu_custom_call.1} parent=1 // loop_header_branch
      %21 = sbr.rel (%p19) target = $region8
    $region5: #{tpu_custom_call.1} parent=1 // loop_body
      %s23 = ssub.s32 %s18, 1
      %s24 = ssub.s32 %s18, 2
      %s25 = sadd.s32 %s18, 1
      %s27 = sadd.s32 %s26, 1
      %p30 = scmp.eq.s32.totalorder %s18, 1
      %p31 = scmp.ne.s32.totalorder %s26, %s28
      %p32 = scmp.eq.s32.totalorder %s18, 0
      %p33 = por %p31, %p32
      %p34 = scmp.ne.s32.totalorder %s26, %s28
      %p35 = scmp.eq.s32.totalorder %s23, 1
      %p36 = por %p34, %p35
      %p37 = scmp.ne.s32.totalorder %s28, %s29
      %p38 = scmp.eq.s32.totalorder %s23, 0
      %p39 = por %p37, %p38
      %p40 = scmp.ne.s32.totalorder %s28, %s29
      %p41 = scmp.eq.s32.totalorder %s24, 1
      %p42 = por %p40, %p41
      %p44 = scmp.ne.s32.totalorder %s29, %s43
      %p45 = scmp.eq.s32.totalorder %s24, 0
      %p46 = por %p44, %p45
      %s47 = ssub.s32 %s18, %s25
      %p48 = scmp.eq.s32.totalorder %s47, 0
      %s50 = sadd.s32 %s49, 1
      %s51 = scalar_select %p48, %s49, %s50
      %p54 = pneg %p48
      %p55 = scmp.eq.s32.totalorder %s18, 1
      %p56 = por %p54, %p55
      %p57 = scmp.ne.s32.totalorder %s49, %s52
      %p58 = scmp.eq.s32.totalorder %s18, 0
      %p59 = por %p57, %p58
      %p60 = scmp.ne.s32.totalorder %s49, %s52
      %p61 = scmp.eq.s32.totalorder %s23, 1
      %p62 = por %p60, %p61
      %p63 = scmp.ne.s32.totalorder %s52, %s53
      %p64 = scmp.eq.s32.totalorder %s23, 0
      %p65 = por %p63, %p64
      %p66 = scmp.ne.s32.totalorder %s52, %s53
      %p67 = scmp.eq.s32.totalorder %s24, 1
      %p68 = por %p66, %p67
      %p70 = scmp.ne.s32.totalorder %s53, %s69
      %p71 = scmp.eq.s32.totalorder %s24, 0
      %p72 = por %p70, %p71
      %s73 = ssub.s32 %s18, %s25
      %p74 = scmp.eq.s32.totalorder %s73, 0
      %s76 = sadd.s32 %s75, 1
      %s77 = scalar_select %p74, %s75, %s76
      %p80 = pneg %p74
      %p81 = scmp.eq.s32.totalorder %s18, 1
      %p82 = por %p80, %p81
      %p83 = scmp.ne.s32.totalorder %s75, %s78
      %p84 = scmp.eq.s32.totalorder %s18, 0
      %p85 = por %p83, %p84
      %p86 = scmp.ne.s32.totalorder %s75, %s78
      %p87 = scmp.eq.s32.totalorder %s23, 1
      %p88 = por %p86, %p87
      %p89 = scmp.ne.s32.totalorder %s78, %s79
      %p90 = scmp.eq.s32.totalorder %s23, 0
      %p91 = por %p89, %p90
      %p92 = scmp.ne.s32.totalorder %s78, %s79
      %p93 = scmp.eq.s32.totalorder %s24, 1
      %p94 = por %p92, %p93
      %p96 = scmp.ne.s32.totalorder %s79, %s95
      %p97 = scmp.eq.s32.totalorder %s24, 0
      %p98 = por %p96, %p97
      %s100 = sadd.s32 %s99, 1
      %p103 = scmp.eq.s32.totalorder %s18, 1
      %p104 = scmp.ne.s32.totalorder %s99, %s101
      %p105 = scmp.eq.s32.totalorder %s18, 0
      %p106 = por %p104, %p105
      %p107 = scmp.ne.s32.totalorder %s99, %s101
      %p108 = scmp.eq.s32.totalorder %s23, 1
      %p109 = por %p107, %p108
      %p110 = scmp.ne.s32.totalorder %s101, %s102
      %p111 = scmp.eq.s32.totalorder %s23, 0
      %p112 = por %p110, %p111
      %p113 = scmp.ne.s32.totalorder %s101, %s102
      %p114 = scmp.eq.s32.totalorder %s24, 1
      %p115 = por %p113, %p114
      %p117 = scmp.ne.s32.totalorder %s102, %s116
      %p118 = scmp.eq.s32.totalorder %s24, 0
      %p119 = por %p117, %p118
      %s121 = sadd.s32 %s120, 1
      %p124 = scmp.eq.s32.totalorder %s18, 1
      %p125 = scmp.ne.s32.totalorder %s120, %s122
      %p126 = scmp.eq.s32.totalorder %s18, 0
      %p127 = por %p125, %p126
      %p128 = scmp.ne.s32.totalorder %s120, %s122
      %p129 = scmp.eq.s32.totalorder %s23, 1
      %p130 = por %p128, %p129
      %p131 = scmp.ne.s32.totalorder %s122, %s123
      %p132 = scmp.eq.s32.totalorder %s23, 0
      %p133 = por %p131, %p132
      %p134 = scmp.ne.s32.totalorder %s122, %s123
      %p135 = scmp.eq.s32.totalorder %s24, 1
      %p136 = por %p134, %p135
      %p138 = scmp.ne.s32.totalorder %s123, %s137
      %p139 = scmp.eq.s32.totalorder %s24, 0
      %p140 = por %p138, %p139
      %s141 = ssub.s32 %s18, %s25
      %p142 = scmp.eq.s32.totalorder %s141, 0
      %s144 = sadd.s32 %s143, 1
      %s145 = scalar_select %p142, %s143, %s144
      %p148 = pneg %p142
      %p149 = scmp.eq.s32.totalorder %s18, 1
      %p150 = por %p148, %p149
      %p151 = scmp.ne.s32.totalorder %s143, %s146
      %p152 = scmp.eq.s32.totalorder %s18, 0
      %p153 = por %p151, %p152
      %p154 = scmp.ne.s32.totalorder %s143, %s146
      %p155 = scmp.eq.s32.totalorder %s23, 1
      %p156 = por %p154, %p155
      %p157 = scmp.ne.s32.totalorder %s146, %s147
      %p158 = scmp.eq.s32.totalorder %s23, 0
      %p159 = por %p157, %p158
      %p160 = scmp.ne.s32.totalorder %s146, %s147
      %p161 = scmp.eq.s32.totalorder %s24, 1
      %p162 = por %p160, %p161
      %p164 = scmp.ne.s32.totalorder %s147, %s163
      %p165 = scmp.eq.s32.totalorder %s24, 0
      %p166 = por %p164, %p165
      %p167 = scmp.le.s32.totalorder 1, %s18
      %p168 = scmp.lt.s32.totalorder %s18, 3
      %p169 = pnand %p167, %p168
      %p170 = pneg %p169
      // Predicated region
      $region9: #{tpu_custom_call.1} parent=5 // pred_check
        _
      $region10: #{tpu_custom_call.1} parent=5 // pred_check_branch
        %172 = sbr.rel (%p169) target = $region12
      $region11: #{tpu_custom_call.1} parent=5 // pred_region
        %s173 = ssub.s32 %s18, 1
        // Predicated region
        $region13: #{tpu_custom_call.1} parent=11 // pred_check
          %p174 = pneg %p39
        $region14: #{tpu_custom_call.1} parent=11 // pred_check_branch
          %176 = sbr.rel (%p174) target = $region16
        $region15: #{tpu_custom_call.1} parent=11 // pred_region
          %178 = vsyncadd [#allocation4], 0
          %s180 = sshll.u32 %s0, 4
          %s181 = int_to_ptr.hbm [resolvable:$true] %s180
          %s182 = sshll.u32 [#allocation3], 4
          %s183 = int_to_ptr.vmem [resolvable:$true] %s182
          %185 = dma.hbm_to_vmem [thread:$0]  %s181, 128, %s183, [#allocation4]
        $region16: #{tpu_custom_call.1} parent=11 // pred_fallthru
          _
        // Predicated region
        $region17: #{tpu_custom_call.1} parent=11 // pred_check
          %p186 = pneg %p112
        $region18: #{tpu_custom_call.1} parent=11 // pred_check_branch
          %188 = sbr.rel (%p186) target = $region20
        $region19: #{tpu_custom_call.1} parent=11 // pred_region
          _
        $region20: #{tpu_custom_call.1} parent=11 // pred_fallthru
          _
        // Predicated region
        $region21: #{tpu_custom_call.1} parent=11 // pred_check
          %p189 = pneg %p133
        $region22: #{tpu_custom_call.1} parent=11 // pred_check_branch
          %191 = sbr.rel (%p189) target = $region24
        $region23: #{tpu_custom_call.1} parent=11 // pred_region
          _
        $region24: #{tpu_custom_call.1} parent=11 // pred_fallthru
          _
      $region12: #{tpu_custom_call.1} parent=5 // pred_fallthru
        _
      %p192 = scmp.lt.s32.totalorder %s18, 2
      // Predicated region
      $region25: #{tpu_custom_call.1} parent=5 // pred_check
        %p193 = pneg %p192
      $region26: #{tpu_custom_call.1} parent=5 // pred_check_branch
        %195 = sbr.rel (%p193) target = $region28
      $region27: #{tpu_custom_call.1} parent=5 // pred_region
        // Predicated region
        $region29: #{tpu_custom_call.1} parent=27 // pred_check
          %p196 = pneg %p59
        $region30: #{tpu_custom_call.1} parent=27 // pred_check_branch
          %198 = sbr.rel (%p196) target = $region32
        $region31: #{tpu_custom_call.1} parent=27 // pred_region
          %s199 = sand.u32 %s18, 1
          %s200 = scalar_lea.sflag [#allocation7], %s199
          %s201 = sand.u32 %s49, 1
          %s202 = smul.addr %s201, 512
          %s203 = scalar_lea.vmem [#allocation6], %s202
          %205 = vsyncadd %s200, 0
          %s206 = smul.addr %s18, 128
          %s207 = smul.addr %s206, 4
          %s208 = scalar_lea.hbm %s1, %s207
          %s209 = sshll.u32 %s208, 4
          %s210 = int_to_ptr.hbm [resolvable:$true] %s209
          %s211 = sshll.u32 %s203, 4
          %s212 = int_to_ptr.vmem [resolvable:$true] %s211
          %217 = dma.hbm_to_vmem [thread:$0]  %s210, 8192, %s212, %s200, 256, 256, 16
        $region32: #{tpu_custom_call.1} parent=27 // pred_fallthru
          _
        // Predicated region
        $region33: #{tpu_custom_call.1} parent=27 // pred_check
          %p218 = pneg %p85
        $region34: #{tpu_custom_call.1} parent=27 // pred_check_branch
          %220 = sbr.rel (%p218) target = $region36
        $region35: #{tpu_custom_call.1} parent=27 // pred_region
          %s221 = sand.u32 %s18, 1
          %s222 = scalar_lea.sflag [#allocation7], %s221
          %s223 = sand.u32 %s75, 1
          %s224 = smul.addr %s223, 4
          %s225 = scalar_lea.vmem [#allocation8], %s224
          %s226 = smul.u32 4, %s18
          %228 = vsyncadd %s222, 0
          %s229 = scalar_lea.hbm %s2, %s226
          %s231 = sshll.u32 %s229, 4
          %s232 = int_to_ptr.hbm [resolvable:$true] %s231
          %s233 = sshll.u32 %s225, 4
          %s234 = int_to_ptr.vmem [resolvable:$true] %s233
          %236 = dma.hbm_to_vmem [thread:$0]  %s232, 64, %s234, %s222
        $region36: #{tpu_custom_call.1} parent=27 // pred_fallthru
          _
      $region28: #{tpu_custom_call.1} parent=5 // pred_fallthru
        _
      %p237 = scmp.le.s32.totalorder 1, %s18
      %p238 = scmp.lt.s32.totalorder %s18, 3
      %p239 = pnand %p237, %p238
      %p240 = pneg %p239
      // Predicated region
      $region37: #{tpu_custom_call.1} parent=5 // pred_check
        _
      $region38: #{tpu_custom_call.1} parent=5 // pred_check_branch
        %242 = sbr.rel (%p239) target = $region40
      $region39: #{tpu_custom_call.1} parent=5 // pred_region
        %s243 = ssub.s32 %s18, 1
        // Predicated region
        $region41: #{tpu_custom_call.1} parent=39 // pred_check
          %p244 = pneg %p39
        $region42: #{tpu_custom_call.1} parent=39 // pred_check_branch
          %246 = sbr.rel (%p244) target = $region44
        $region43: #{tpu_custom_call.1} parent=39 // pred_region
          %248 = dma.done [#allocation4], 128
        $region44: #{tpu_custom_call.1} parent=39 // pred_fallthru
          _
        %s249 = sand.u32 %s23, 1
        %s250 = scalar_lea.sflag [#allocation7], %s249
        %s251 = sand.u32 %s52, 1
        %s252 = smul.addr %s251, 512
        %s253 = scalar_lea.vmem [#allocation6], %s252
        // Predicated region
        $region45: #{tpu_custom_call.1} parent=39 // pred_check
          %p254 = pneg %p65
        $region46: #{tpu_custom_call.1} parent=39 // pred_check_branch
          %256 = sbr.rel (%p254) target = $region48
        $region47: #{tpu_custom_call.1} parent=39 // pred_region
          %258 = dma.done %s250, 8192
        $region48: #{tpu_custom_call.1} parent=39 // pred_fallthru
          _
        %s259 = sand.u32 %s23, 1
        %s260 = scalar_lea.sflag [#allocation7], %s259
        %s261 = sand.u32 %s78, 1
        %s262 = smul.addr %s261, 4
        %s263 = scalar_lea.vmem [#allocation8], %s262
        // Predicated region
        $region49: #{tpu_custom_call.1} parent=39 // pred_check
          %p264 = pneg %p91
        $region50: #{tpu_custom_call.1} parent=39 // pred_check_branch
          %266 = sbr.rel (%p264) target = $region52
        $region51: #{tpu_custom_call.1} parent=39 // pred_region
          %268 = dma.done %s260, 64
        $region52: #{tpu_custom_call.1} parent=39 // pred_fallthru
          _
        %p269 = pneg %p39
        %p270 = pneg %p36
        %s271 = sand.u32 %s23, 1
        %s272 = scalar_lea.sflag [#allocation7], %s271
        %s273 = sand.u32 %s52, 1
        %s274 = smul.addr %s273, 512
        %s275 = scalar_lea.vmem [#allocation6], %s274
        %p276 = pneg %p65
        %p277 = pneg %p62
        %s278 = sand.u32 %s23, 1
        %s279 = scalar_lea.sflag [#allocation7], %s278
        %s280 = sand.u32 %s78, 1
        %s281 = smul.addr %s280, 4
        %s282 = scalar_lea.vmem [#allocation8], %s281
        %p283 = pneg %p91
        %p284 = pneg %p88
        %p285 = pneg %p112
        %p286 = pneg %p109
        %p287 = pneg %p133
        %p288 = pneg %p130
        %p289 = pneg %p159
        %p290 = pneg %p156
        %s291 = sand.u32 %s146, 1
        %s292 = scalar_lea.sflag [#allocation5], %s291
        %s293 = sand.u32 %s146, 1
        %s294 = smul.addr %s293, 32
        %s295 = scalar_lea.vmem [#allocation9], %s294
        %s296 = smul.u32 4, %s23
        %s297 = smul.u32 4, %s23
        %v298 = vld [vmem:[#allocation3] sm:$0xff]
        %v299 = vld [vmem:[%s253] sm:$0xff]
        %v300 = vld [vmem:[%s253 + $0x8] sm:$0xff]
        %v301 = vld [vmem:[%s253 + $0x10] sm:$0xff]
        %v302 = vld [vmem:[%s253 + $0x18] sm:$0xff]
        %v303 = vld [vmem:[%s253 + $0x20] sm:$0xff]
        %v304 = vld [vmem:[%s253 + $0x28] sm:$0xff]
        %v305 = vld [vmem:[%s253 + $0x30] sm:$0xff]
        %v306 = vld [vmem:[%s253 + $0x38] sm:$0xff]
        %v307 = vld [vmem:[%s253 + $0x40] sm:$0xff]
        %v308 = vld [vmem:[%s253 + $0x48] sm:$0xff]
        %v309 = vld [vmem:[%s253 + $0x50] sm:$0xff]
        %v310 = vld [vmem:[%s253 + $0x58] sm:$0xff]
        %v311 = vld [vmem:[%s253 + $0x60] sm:$0xff]
        %v312 = vld [vmem:[%s253 + $0x68] sm:$0xff]
        %v313 = vld [vmem:[%s253 + $0x70] sm:$0xff]
        %v314 = vld [vmem:[%s253 + $0x78] sm:$0xff]
        %v315 = vld [vmem:[%s253 + $0x80] sm:$0xff]
        %v316 = vld [vmem:[%s253 + $0x88] sm:$0xff]
        %v317 = vld [vmem:[%s253 + $0x90] sm:$0xff]
        %v318 = vld [vmem:[%s253 + $0x98] sm:$0xff]
        %v319 = vld [vmem:[%s253 + $0xa0] sm:$0xff]
        %v320 = vld [vmem:[%s253 + $0xa8] sm:$0xff]
        %v321 = vld [vmem:[%s253 + $0xb0] sm:$0xff]
        %v322 = vld [vmem:[%s253 + $0xb8] sm:$0xff]
        %v323 = vld [vmem:[%s253 + $0xc0] sm:$0xff]
        %v324 = vld [vmem:[%s253 + $0xc8] sm:$0xff]
        %v325 = vld [vmem:[%s253 + $0xd0] sm:$0xff]
        %v326 = vld [vmem:[%s253 + $0xd8] sm:$0xff]
        %v327 = vld [vmem:[%s253 + $0xe0] sm:$0xff]
        %v328 = vld [vmem:[%s253 + $0xe8] sm:$0xff]
        %v329 = vld [vmem:[%s253 + $0xf0] sm:$0xff]
        %v330 = vld [vmem:[%s253 + $0xf8] sm:$0xff]
        %v331 = vld [vmem:[%s253 + $0x100] sm:$0xff]
        %v332 = vld [vmem:[%s253 + $0x108] sm:$0xff]
        %v333 = vld [vmem:[%s253 + $0x110] sm:$0xff]
        %v334 = vld [vmem:[%s253 + $0x118] sm:$0xff]
        %v335 = vld [vmem:[%s253 + $0x120] sm:$0xff]
        %v336 = vld [vmem:[%s253 + $0x128] sm:$0xff]
        %v337 = vld [vmem:[%s253 + $0x130] sm:$0xff]
        %v338 = vld [vmem:[%s253 + $0x138] sm:$0xff]
        %v339 = vld [vmem:[%s253 + $0x140] sm:$0xff]
        %v340 = vld [vmem:[%s253 + $0x148] sm:$0xff]
        %v341 = vld [vmem:[%s253 + $0x150] sm:$0xff]
        %v342 = vld [vmem:[%s253 + $0x158] sm:$0xff]
        %v343 = vld [vmem:[%s253 + $0x160] sm:$0xff]
        %v344 = vld [vmem:[%s253 + $0x168] sm:$0xff]
        %v345 = vld [vmem:[%s253 + $0x170] sm:$0xff]
        %v346 = vld [vmem:[%s253 + $0x178] sm:$0xff]
        %v347 = vld [vmem:[%s253 + $0x180] sm:$0xff]
        %v348 = vld [vmem:[%s253 + $0x188] sm:$0xff]
        %v349 = vld [vmem:[%s253 + $0x190] sm:$0xff]
        %v350 = vld [vmem:[%s253 + $0x198] sm:$0xff]
        %v351 = vld [vmem:[%s253 + $0x1a0] sm:$0xff]
        %v352 = vld [vmem:[%s253 + $0x1a8] sm:$0xff]
        %v353 = vld [vmem:[%s253 + $0x1b0] sm:$0xff]
        %v354 = vld [vmem:[%s253 + $0x1b8] sm:$0xff]
        %v355 = vld [vmem:[%s253 + $0x1c0] sm:$0xff]
        %v356 = vld [vmem:[%s253 + $0x1c8] sm:$0xff]
        %v357 = vld [vmem:[%s253 + $0x1d0] sm:$0xff]
        %v358 = vld [vmem:[%s253 + $0x1d8] sm:$0xff]
        %v359 = vld [vmem:[%s253 + $0x1e0] sm:$0xff]
        %v360 = vld [vmem:[%s253 + $0x1e8] sm:$0xff]
        %v361 = vld [vmem:[%s253 + $0x1f0] sm:$0xff]
        %v362 = vld [vmem:[%s253 + $0x1f8] sm:$0xff]
        %v363 = vld [vmem:[%s263] sm:$0xf]
        %v364 = vunpack.c.l.bf16 %v363
        %v366 = vperm.slane %v364, 0
        %v367 = vperm.slane %v364, 2
        %v368 = vperm.slane %v364, 4
        %v369 = vperm.slane %v364, 6
        %v374 = vperm.slane %v366, 0
        %v375 = vperm.slane %v367, 0
        %v376 = vperm.slane %v368, 0
        %v377 = vperm.slane %v369, 0
        %v379 = vunpack.c.l.b16 %v298
        %v380 = vunpack.c.h.b16 %v298
        %v381 = vpack.c.b16 %v379, %v379
        %v382 = vpack.c.b16 %v380, %v380
        %v449 = vunpack.c.l.b16 %v299
        %v450 = vunpack.c.h.b16 %v299
        %v451 = vunpack.c.l.b16 %v300
        %v452 = vunpack.c.h.b16 %v300
        %v453 = vunpack.c.l.b16 %v301
        %v454 = vunpack.c.h.b16 %v301
        %v455 = vunpack.c.l.b16 %v302
        %v456 = vunpack.c.h.b16 %v302
        %v457 = vunpack.c.l.b16 %v303
        %v458 = vunpack.c.h.b16 %v303
        %v459 = vunpack.c.l.b16 %v304
        %v460 = vunpack.c.h.b16 %v304
        %v461 = vunpack.c.l.b16 %v305
        %v462 = vunpack.c.h.b16 %v305
        %v463 = vunpack.c.l.b16 %v306
        %v464 = vunpack.c.h.b16 %v306
        %v465 = vunpack.c.l.b16 %v307
        %v466 = vunpack.c.h.b16 %v307
        %v467 = vunpack.c.l.b16 %v308
        %v468 = vunpack.c.h.b16 %v308
        %v469 = vunpack.c.l.b16 %v309
        %v470 = vunpack.c.h.b16 %v309
        %v471 = vunpack.c.l.b16 %v310
        %v472 = vunpack.c.h.b16 %v310
        %v473 = vunpack.c.l.b16 %v311
        %v474 = vunpack.c.h.b16 %v311
        %v475 = vunpack.c.l.b16 %v312
        %v476 = vunpack.c.h.b16 %v312
        %v477 = vunpack.c.l.b16 %v313
        %v478 = vunpack.c.h.b16 %v313
        %v479 = vunpack.c.l.b16 %v314
        %v480 = vunpack.c.h.b16 %v314
        %v481 = vunpack.c.l.b16 %v315
        %v482 = vunpack.c.h.b16 %v315
        %v483 = vunpack.c.l.b16 %v316
        %v484 = vunpack.c.h.b16 %v316
        %v485 = vunpack.c.l.b16 %v317
        %v486 = vunpack.c.h.b16 %v317
        %v487 = vunpack.c.l.b16 %v318
        %v488 = vunpack.c.h.b16 %v318
        %v489 = vunpack.c.l.b16 %v319
        %v490 = vunpack.c.h.b16 %v319
        %v491 = vunpack.c.l.b16 %v320
        %v492 = vunpack.c.h.b16 %v320
        %v493 = vunpack.c.l.b16 %v321
        %v494 = vunpack.c.h.b16 %v321
        %v495 = vunpack.c.l.b16 %v322
        %v496 = vunpack.c.h.b16 %v322
        %v497 = vunpack.c.l.b16 %v323
        %v498 = vunpack.c.h.b16 %v323
        %v499 = vunpack.c.l.b16 %v324
        %v500 = vunpack.c.h.b16 %v324
        %v501 = vunpack.c.l.b16 %v325
        %v502 = vunpack.c.h.b16 %v325
        %v503 = vunpack.c.l.b16 %v326
        %v504 = vunpack.c.h.b16 %v326
        %v505 = vunpack.c.l.b16 %v327
        %v506 = vunpack.c.h.b16 %v327
        %v507 = vunpack.c.l.b16 %v328
        %v508 = vunpack.c.h.b16 %v328
        %v509 = vunpack.c.l.b16 %v329
        %v510 = vunpack.c.h.b16 %v329
        %v511 = vunpack.c.l.b16 %v330
        %v512 = vunpack.c.h.b16 %v330
        %v513 = vunpack.c.l.b16 %v331
        %v514 = vunpack.c.h.b16 %v331
        %v515 = vunpack.c.l.b16 %v332
        %v516 = vunpack.c.h.b16 %v332
        %v517 = vunpack.c.l.b16 %v333
        %v518 = vunpack.c.h.b16 %v333
        %v519 = vunpack.c.l.b16 %v334
        %v520 = vunpack.c.h.b16 %v334
        %v521 = vunpack.c.l.b16 %v335
        %v522 = vunpack.c.h.b16 %v335
        %v523 = vunpack.c.l.b16 %v336
        %v524 = vunpack.c.h.b16 %v336
        %v525 = vunpack.c.l.b16 %v337
        %v526 = vunpack.c.h.b16 %v337
        %v527 = vunpack.c.l.b16 %v338
        %v528 = vunpack.c.h.b16 %v338
        %v529 = vunpack.c.l.b16 %v339
        %v530 = vunpack.c.h.b16 %v339
        %v531 = vunpack.c.l.b16 %v340
        %v532 = vunpack.c.h.b16 %v340
        %v533 = vunpack.c.l.b16 %v341
        %v534 = vunpack.c.h.b16 %v341
        %v535 = vunpack.c.l.b16 %v342
        %v536 = vunpack.c.h.b16 %v342
        %v537 = vunpack.c.l.b16 %v343
        %v538 = vunpack.c.h.b16 %v343
        %v539 = vunpack.c.l.b16 %v344
        %v540 = vunpack.c.h.b16 %v344
        %v541 = vunpack.c.l.b16 %v345
        %v542 = vunpack.c.h.b16 %v345
        %v543 = vunpack.c.l.b16 %v346
        %v544 = vunpack.c.h.b16 %v346
        %v545 = vunpack.c.l.b16 %v347
        %v546 = vunpack.c.h.b16 %v347
        %v547 = vunpack.c.l.b16 %v348
        %v548 = vunpack.c.h.b16 %v348
        %v549 = vunpack.c.l.b16 %v349
        %v550 = vunpack.c.h.b16 %v349
        %v551 = vunpack.c.l.b16 %v350
        %v552 = vunpack.c.h.b16 %v350
        %v553 = vunpack.c.l.b16 %v351
        %v554 = vunpack.c.h.b16 %v351
        %v555 = vunpack.c.l.b16 %v352
        %v556 = vunpack.c.h.b16 %v352
        %v557 = vunpack.c.l.b16 %v353
        %v558 = vunpack.c.h.b16 %v353
        %v559 = vunpack.c.l.b16 %v354
        %v560 = vunpack.c.h.b16 %v354
        %v561 = vunpack.c.l.b16 %v355
        %v562 = vunpack.c.h.b16 %v355
        %v563 = vunpack.c.l.b16 %v356
        %v564 = vunpack.c.h.b16 %v356
        %v565 = vunpack.c.l.b16 %v357
        %v566 = vunpack.c.h.b16 %v357
        %v567 = vunpack.c.l.b16 %v358
        %v568 = vunpack.c.h.b16 %v358
        %v569 = vunpack.c.l.b16 %v359
        %v570 = vunpack.c.h.b16 %v359
        %v571 = vunpack.c.l.b16 %v360
        %v572 = vunpack.c.h.b16 %v360
        %v573 = vunpack.c.l.b16 %v361
        %v574 = vunpack.c.h.b16 %v361
        %v575 = vunpack.c.l.b16 %v362
        %v576 = vunpack.c.h.b16 %v362
        %v577 = vpack.c.b16 %v453, %v449
        %v578 = vpack.c.b16 %v454, %v450
        %v579 = vpack.c.b16 %v455, %v451
        %v580 = vpack.c.b16 %v456, %v452
        %v581 = vpack.c.b16 %v461, %v457
        %v582 = vpack.c.b16 %v462, %v458
        %v583 = vpack.c.b16 %v463, %v459
        %v584 = vpack.c.b16 %v464, %v460
        %v585 = vpack.c.b16 %v469, %v465
        %v586 = vpack.c.b16 %v470, %v466
        %v587 = vpack.c.b16 %v471, %v467
        %v588 = vpack.c.b16 %v472, %v468
        %v589 = vpack.c.b16 %v477, %v473
        %v590 = vpack.c.b16 %v478, %v474
        %v591 = vpack.c.b16 %v479, %v475
        %v592 = vpack.c.b16 %v480, %v476
        %v593 = vpack.c.b16 %v485, %v481
        %v594 = vpack.c.b16 %v486, %v482
        %v595 = vpack.c.b16 %v487, %v483
        %v596 = vpack.c.b16 %v488, %v484
        %v597 = vpack.c.b16 %v493, %v489
        %v598 = vpack.c.b16 %v494, %v490
        %v599 = vpack.c.b16 %v495, %v491
        %v600 = vpack.c.b16 %v496, %v492
        %v601 = vpack.c.b16 %v501, %v497
        %v602 = vpack.c.b16 %v502, %v498
        %v603 = vpack.c.b16 %v503, %v499
        %v604 = vpack.c.b16 %v504, %v500
        %v605 = vpack.c.b16 %v509, %v505
        %v606 = vpack.c.b16 %v510, %v506
        %v607 = vpack.c.b16 %v511, %v507
        %v608 = vpack.c.b16 %v512, %v508
        %v609 = vpack.c.b16 %v517, %v513
        %v610 = vpack.c.b16 %v518, %v514
        %v611 = vpack.c.b16 %v519, %v515
        %v612 = vpack.c.b16 %v520, %v516
        %v613 = vpack.c.b16 %v525, %v521
        %v614 = vpack.c.b16 %v526, %v522
        %v615 = vpack.c.b16 %v527, %v523
        %v616 = vpack.c.b16 %v528, %v524
        %v617 = vpack.c.b16 %v533, %v529
        %v618 = vpack.c.b16 %v534, %v530
        %v619 = vpack.c.b16 %v535, %v531
        %v620 = vpack.c.b16 %v536, %v532
        %v621 = vpack.c.b16 %v541, %v537
        %v622 = vpack.c.b16 %v542, %v538
        %v623 = vpack.c.b16 %v543, %v539
        %v624 = vpack.c.b16 %v544, %v540
        %v625 = vpack.c.b16 %v549, %v545
        %v626 = vpack.c.b16 %v550, %v546
        %v627 = vpack.c.b16 %v551, %v547
        %v628 = vpack.c.b16 %v552, %v548
        %v629 = vpack.c.b16 %v557, %v553
        %v630 = vpack.c.b16 %v558, %v554
        %v631 = vpack.c.b16 %v559, %v555
        %v632 = vpack.c.b16 %v560, %v556
        %v633 = vpack.c.b16 %v565, %v561
        %v634 = vpack.c.b16 %v566, %v562
        %v635 = vpack.c.b16 %v567, %v563
        %v636 = vpack.c.b16 %v568, %v564
        %v637 = vpack.c.b16 %v573, %v569
        %v638 = vpack.c.b16 %v574, %v570
        %v639 = vpack.c.b16 %v575, %v571
        %v640 = vpack.c.b16 %v576, %v572
        %705 = vmatpush.bf16.msra.mxu0 %v605
        %706 = vmatpush.bf16.msra.mxu0 %v601
        %707 = vmatpush.bf16.msra.mxu0 %v597
        %708 = vmatpush.bf16.msra.mxu0 %v593
        %709 = vmatpush.bf16.msra.mxu0 %v589
        %710 = vmatpush.bf16.msra.mxu0 %v585
        %711 = vmatpush.bf16.msra.mxu0 %v581
        %712 = vmatpush.bf16.msra.mxu0 %v577
        %713 = vmatmul.bf16.gmra.mxu0 %v381
        %v714 = vpop.f32.mrf.mxu0
        %v715 = vadd.f32 %v374, %v714
        %v716 = vpop.f32.mrf.mxu0
        %717 = vdwg.mxu0
        %718 = vmatpush.bf16.msra.mxu0 %v637
        %719 = vmatpush.bf16.msra.mxu0 %v633
        %720 = vmatpush.bf16.msra.mxu0 %v629
        %721 = vmatpush.bf16.msra.mxu0 %v625
        %722 = vmatpush.bf16.msra.mxu0 %v621
        %723 = vmatpush.bf16.msra.mxu0 %v617
        %724 = vmatpush.bf16.msra.mxu0 %v613
        %725 = vmatpush.bf16.msra.mxu0 %v609
        %726 = vmatmul.bf16.gmra.mxu0 %v382
        %v727 = vpop.f32.mrf.mxu0
        %v728 = vadd.f32 %v715, %v727
        %v729 = vpop.f32.mrf.mxu0
        %730 = vdwg.mxu0
        %731 = vmatpush.bf16.msra.mxu0 %v606
        %732 = vmatpush.bf16.msra.mxu0 %v602
        %733 = vmatpush.bf16.msra.mxu0 %v598
        %734 = vmatpush.bf16.msra.mxu0 %v594
        %735 = vmatpush.bf16.msra.mxu0 %v590
        %736 = vmatpush.bf16.msra.mxu0 %v586
        %737 = vmatpush.bf16.msra.mxu0 %v582
        %738 = vmatpush.bf16.msra.mxu0 %v578
        %739 = vmatmul.bf16.gmra.mxu0 %v381
        %v740 = vpop.f32.mrf.mxu0
        %v741 = vadd.f32 %v375, %v740
        %v742 = vpop.f32.mrf.mxu0
        %743 = vdwg.mxu0
        %744 = vmatpush.bf16.msra.mxu0 %v638
        %745 = vmatpush.bf16.msra.mxu0 %v634
        %746 = vmatpush.bf16.msra.mxu0 %v630
        %747 = vmatpush.bf16.msra.mxu0 %v626
        %748 = vmatpush.bf16.msra.mxu0 %v622
        %749 = vmatpush.bf16.msra.mxu0 %v618
        %750 = vmatpush.bf16.msra.mxu0 %v614
        %751 = vmatpush.bf16.msra.mxu0 %v610
        %752 = vmatmul.bf16.gmra.mxu0 %v382
        %v753 = vpop.f32.mrf.mxu0
        %v754 = vadd.f32 %v741, %v753
        %v755 = vpop.f32.mrf.mxu0
        %756 = vdwg.mxu0
        %757 = vmatpush.bf16.msra.mxu0 %v607
        %758 = vmatpush.bf16.msra.mxu0 %v603
        %759 = vmatpush.bf16.msra.mxu0 %v599
        %760 = vmatpush.bf16.msra.mxu0 %v595
        %761 = vmatpush.bf16.msra.mxu0 %v591
        %762 = vmatpush.bf16.msra.mxu0 %v587
        %763 = vmatpush.bf16.msra.mxu0 %v583
        %764 = vmatpush.bf16.msra.mxu0 %v579
        %765 = vmatmul.bf16.gmra.mxu0 %v381
        %v766 = vpop.f32.mrf.mxu0
        %v767 = vadd.f32 %v376, %v766
        %v768 = vpop.f32.mrf.mxu0
        %769 = vdwg.mxu0
        %770 = vmatpush.bf16.msra.mxu0 %v639
        %771 = vmatpush.bf16.msra.mxu0 %v635
        %772 = vmatpush.bf16.msra.mxu0 %v631
        %773 = vmatpush.bf16.msra.mxu0 %v627
        %774 = vmatpush.bf16.msra.mxu0 %v623
        %775 = vmatpush.bf16.msra.mxu0 %v619
        %776 = vmatpush.bf16.msra.mxu0 %v615
        %777 = vmatpush.bf16.msra.mxu0 %v611
        %778 = vmatmul.bf16.gmra.mxu0 %v382
        %v779 = vpop.f32.mrf.mxu0
        %v780 = vadd.f32 %v767, %v779
        %v781 = vpop.f32.mrf.mxu0
        %782 = vdwg.mxu0
        %783 = vmatpush.bf16.msra.mxu0 %v608
        %784 = vmatpush.bf16.msra.mxu0 %v604
        %785 = vmatpush.bf16.msra.mxu0 %v600
        %786 = vmatpush.bf16.msra.mxu0 %v596
        %787 = vmatpush.bf16.msra.mxu0 %v592
        %788 = vmatpush.bf16.msra.mxu0 %v588
        %789 = vmatpush.bf16.msra.mxu0 %v584
        %790 = vmatpush.bf16.msra.mxu0 %v580
        %791 = vmatmul.bf16.gmra.mxu0 %v381
        %v792 = vpop.f32.mrf.mxu0
        %v793 = vadd.f32 %v377, %v792
        %v794 = vpop.f32.mrf.mxu0
        %795 = vdwg.mxu0
        %796 = vmatpush.bf16.msra.mxu0 %v640
        %797 = vmatpush.bf16.msra.mxu0 %v636
        %798 = vmatpush.bf16.msra.mxu0 %v632
        %799 = vmatpush.bf16.msra.mxu0 %v628
        %800 = vmatpush.bf16.msra.mxu0 %v624
        %801 = vmatpush.bf16.msra.mxu0 %v620
        %802 = vmatpush.bf16.msra.mxu0 %v616
        %803 = vmatpush.bf16.msra.mxu0 %v612
        %804 = vmatmul.bf16.gmra.mxu0 %v382
        %v805 = vpop.f32.mrf.mxu0
        %v806 = vadd.f32 %v793, %v805
        %v807 = vpop.f32.mrf.mxu0
        %808 = vdwg.mxu0
        %809 = vst [vmem:[#allocation2] sm:$0xff] %v728
        %810 = vst [vmem:[#allocation2 + $0x8] sm:$0xff] %v754
        %811 = vst [vmem:[#allocation2 + $0x10] sm:$0xff] %v780
        %812 = vst [vmem:[#allocation2 + $0x18] sm:$0xff] %v806
        %v813 = vld [vmem:[%s3] sm:$0x1]
        %v814 = vld [vmem:[%s4] sm:$0x1]
        %v815 = vld [vmem:[#allocation2] sm:$0xff]
        %816 = vadd.xlane.f32.xlu0 %v815
        %v817 = vpop.xlane.xlu0 %816
        %v818 = vrcp.pop 128.0
        %v819 = vmul.f32 128.0, %v818
        %v820 = vsub.f32 1.0, %v819
        %v821 = vmul.f32 %v818, %v820
        %v822 = vadd.f32 %v818, %v821
        %vm823 = vweird.f32 %v818
        %v824 = vsel %vm823, %v818, %v822
        %v825 = vmul.f32 %v817, %v824
        %v826 = vsub.f32 %v815, %v825
        %v827 = vmul.f32 %v826, %v826
        %828 = vadd.xlane.f32.xlu0 %v827
        %v829 = vpop.xlane.xlu0 %828
        %v830 = vmul.f32 %v829, %v824
        %v831 = vadd.f32 %v830, 1e-05
        %v832 = vrsqrt.pop %v831
        %v833 = vmul.f32 %v832, %v831
        %v834 = vmul.f32 %v833, %v832
        %v835 = vmul.f32 0.5, %v834
        %v836 = vsub.f32 1.5, %v835
        %v837 = vmul.f32 %v832, %v836
        %vm838 = vweird.f32 %v831
        %vm839 = vweird.f32 %v832
        %vm840 = vmor %vm838, %vm839
        %v841 = vsel %vm840, %v832, %v837
        %v842 = vmul.f32 %v826, %v841
        %v844 = vperm.slane %v813, 0
        %v846 = vmul.f32 %v842, %v844
        %v848 = vperm.slane %v814, 0
        %v850 = vadd.f32 %v846, %v848
        %851 = vst [vmem:[%s295] sm:$0xff] %v850
        %v852 = vld [vmem:[#allocation2 + $0x8] sm:$0xff]
        %853 = vadd.xlane.f32.xlu0 %v852
        %v854 = vpop.xlane.xlu0 %853
        %v855 = vmul.f32 %v854, %v824
        %v856 = vsub.f32 %v852, %v855
        %v857 = vmul.f32 %v856, %v856
        %858 = vadd.xlane.f32.xlu0 %v857
        %v859 = vpop.xlane.xlu0 %858
        %v860 = vmul.f32 %v859, %v824
        %v861 = vadd.f32 %v860, 1e-05
        %v862 = vrsqrt.pop %v861
        %v863 = vmul.f32 %v862, %v861
        %v864 = vmul.f32 %v863, %v862
        %v865 = vmul.f32 0.5, %v864
        %v866 = vsub.f32 1.5, %v865
        %v867 = vmul.f32 %v862, %v866
        %vm868 = vweird.f32 %v861
        %vm869 = vweird.f32 %v862
        %vm870 = vmor %vm868, %vm869
        %v871 = vsel %vm870, %v862, %v867
        %v872 = vmul.f32 %v856, %v871
        %v873 = vmul.f32 %v872, %v844
        %v874 = vadd.f32 %v873, %v848
        %875 = vst [vmem:[%s295 + $0x8] sm:$0xff] %v874
        %v876 = vld [vmem:[#allocation2 + $0x10] sm:$0xff]
        %877 = vadd.xlane.f32.xlu0 %v876
        %v878 = vpop.xlane.xlu0 %877
        %v879 = vmul.f32 %v878, %v824
        %v880 = vsub.f32 %v876, %v879
        %v881 = vmul.f32 %v880, %v880
        %882 = vadd.xlane.f32.xlu0 %v881
        %v883 = vpop.xlane.xlu0 %882
        %v884 = vmul.f32 %v883, %v824
        %v885 = vadd.f32 %v884, 1e-05
        %v886 = vrsqrt.pop %v885
        %v887 = vmul.f32 %v886, %v885
        %v888 = vmul.f32 %v887, %v886
        %v889 = vmul.f32 0.5, %v888
        %v890 = vsub.f32 1.5, %v889
        %v891 = vmul.f32 %v886, %v890
        %vm892 = vweird.f32 %v885
        %vm893 = vweird.f32 %v886
        %vm894 = vmor %vm892, %vm893
        %v895 = vsel %vm894, %v886, %v891
        %v896 = vmul.f32 %v880, %v895
        %v897 = vmul.f32 %v896, %v844
        %v898 = vadd.f32 %v897, %v848
        %899 = vst [vmem:[%s295 + $0x10] sm:$0xff] %v898
        %v900 = vld [vmem:[#allocation2 + $0x18] sm:$0xff]
        %901 = vadd.xlane.f32.xlu0 %v900
        %v902 = vpop.xlane.xlu0 %901
        %v903 = vmul.f32 %v902, %v824
        %v904 = vsub.f32 %v900, %v903
        %v905 = vmul.f32 %v904, %v904
        %906 = vadd.xlane.f32.xlu0 %v905
        %v907 = vpop.xlane.xlu0 %906
        %v908 = vmul.f32 %v907, %v824
        %v909 = vadd.f32 %v908, 1e-05
        %v910 = vrsqrt.pop %v909
        %v911 = vmul.f32 %v910, %v909
        %v912 = vmul.f32 %v911, %v910
        %v913 = vmul.f32 0.5, %v912
        %v914 = vsub.f32 1.5, %v913
        %v915 = vmul.f32 %v910, %v914
        %vm916 = vweird.f32 %v909
        %vm917 = vweird.f32 %v910
        %vm918 = vmor %vm916, %vm917
        %v919 = vsel %vm918, %v910, %v915
        %v920 = vmul.f32 %v904, %v919
        %v921 = vmul.f32 %v920, %v844
        %v922 = vadd.f32 %v921, %v848
        %923 = vst [vmem:[%s295 + $0x18] sm:$0xff] %v922
        %s924 = sand.u32 %s146, 1
        %s925 = scalar_lea.sflag [#allocation5], %s924
        %s926 = sand.u32 %s146, 1
        %s927 = smul.addr %s926, 32
        %s928 = scalar_lea.vmem [#allocation9], %s927
        // Predicated region
        $region53: #{tpu_custom_call.1} parent=39 // pred_check
          %p929 = pneg %p156
        $region54: #{tpu_custom_call.1} parent=39 // pred_check_branch
          %931 = sbr.rel (%p929) target = $region56
        $region55: #{tpu_custom_call.1} parent=39 // pred_region
          %s932 = smul.u32 4, %s23
          %934 = vsyncadd %s925, 0
          %s935 = smul.addr %s932, 8
          %s936 = scalar_lea.hbm %s5, %s935
          %s938 = sshll.u32 %s928, 4
          %s939 = int_to_ptr.vmem [resolvable:$true] %s938
          %s940 = sshll.u32 %s936, 4
          %s941 = int_to_ptr.hbm [resolvable:$true] %s940
          %943 = dma.vmem_to_hbm [thread:$0]  %s939, 512, %s941, %s925
        $region56: #{tpu_custom_call.1} parent=39 // pred_fallthru
          _
      $region40: #{tpu_custom_call.1} parent=5 // pred_fallthru
        _
      %p944 = scmp.le.s32.totalorder 2, %s18
      // Predicated region
      $region57: #{tpu_custom_call.1} parent=5 // pred_check
        %p945 = pneg %p944
      $region58: #{tpu_custom_call.1} parent=5 // pred_check_branch
        %947 = sbr.rel (%p945) target = $region60
      $region59: #{tpu_custom_call.1} parent=5 // pred_region
        %s948 = ssub.s32 %s18, 2
        // Predicated region
        $region61: #{tpu_custom_call.1} parent=59 // pred_check
          %p949 = pneg %p162
        $region62: #{tpu_custom_call.1} parent=59 // pred_check_branch
          %951 = sbr.rel (%p949) target = $region64
        $region63: #{tpu_custom_call.1} parent=59 // pred_region
          %s952 = sand.u32 %s147, 1
          %s953 = scalar_lea.sflag [#allocation5], %s952
          %s954 = sand.u32 %s147, 1
          %s955 = smul.addr %s954, 32
          %s956 = scalar_lea.vmem [#allocation9], %s955
          %958 = dma.done %s953, 512
        $region64: #{tpu_custom_call.1} parent=59 // pred_fallthru
          _
      $region60: #{tpu_custom_call.1} parent=5 // pred_fallthru
        _
    $region6: #{tpu_custom_call.1} parent=1 // loop_footer
      %s22 = sadd.s32 1, %s18
    $region7: #{tpu_custom_call.1} parent=1 // loop_footer_branch
      %17 = sbr.rel target = $region3
    $region8: #{tpu_custom_call.1} parent=1 // loop_exit
      _
    %959 = vsyncpa [#allocation4], 1
    %s960 = scalar_lea.sflag [#allocation4], 1
    %961 = vsyncpa %s960, 1
    %962 = vsyncpa [#allocation7], 1
    %s963 = scalar_lea.sflag [#allocation7], 1
    %964 = vsyncpa %s963, 1
    %965 = vsyncpa [#allocation5], 1
    %s966 = scalar_lea.sflag [#allocation5], 1
    %967 = vsyncpa %s966, 1

</llo_original>
